<compile_context>
chip_gen: v5e
topology: v5e:2x2
jax: 0.10.0
libtpu: 0.0.40
codegen_flags: <defaults>
</compile_context>

<pallas_src>
import jax
import jax.numpy as jnp
from jax import lax
from jax.experimental import pallas as pl
from jax.experimental.pallas import tpu as pltpu


def mlp_kernel(x_ref, w1_ref, b1_ref, w2_ref, b2_ref, w3_ref, b3_ref,
               w4t_ref, b4_ref, o_ref):
    cdt = w1_ref.dtype  # compute dtype (f32 or bf16); accumulation stays f32.
    # Layers 1-3: Linear -> ReLU (Dropout == identity in eval mode).
    h = jnp.dot(x_ref[...].astype(cdt), w1_ref[...],
                preferred_element_type=jnp.float32)
    h = jnp.maximum(h + b1_ref[...], 0.0)
    h = jnp.dot(h.astype(cdt), w2_ref[...], preferred_element_type=jnp.float32)
    h = jnp.maximum(h + b2_ref[...], 0.0)
    h = jnp.dot(h.astype(cdt), w3_ref[...], preferred_element_type=jnp.float32)
    h = jnp.maximum(h + b3_ref[...], 0.0)
    # Output head: contract H of (1,H) against H of (tile_m,H) -> (1,tile_m).
    # Batch sits on lanes (dense vst); no materialized transpose of h.
    out = lax.dot_general(w4t_ref[...], h.astype(cdt),
                          (((1,), (1,)), ((), ())),
                          preferred_element_type=jnp.float32)
    o_ref[...] = (out + b4_ref[...]).astype(o_ref.dtype)


def _round_up(v, m):
    return ((v + m - 1) // m) * m


def precipitation_classifier(x, params, *, tile_m=None, use_bf16=False,
                             small_batch_threshold=512, tile_cap=2048):
    """x: [B, input_size]. params: dict of w1..w4 ([in,out]) and b1..b4 ([1,out])."""
    B, IN = x.shape
    H = params["w1"].shape[1]

    w_dtype = jnp.bfloat16 if use_bf16 else jnp.float32
    w_itemsize = 2 if use_bf16 else 4
    w1 = params["w1"].astype(w_dtype); b1 = params["b1"]
    w2 = params["w2"].astype(w_dtype); b2 = params["b2"]
    w3 = params["w3"].astype(w_dtype); b3 = params["b3"]
    w4t = params["w4"].T.astype(w_dtype)   # (1, H) row for the lane-dense head
    b4 = params["b4"]                      # (1, 1)
    x_in = x.astype(w_dtype) if use_bf16 else x

    # --- tiling --------------------------------------------------------------
    if tile_m is None:
        if B <= small_batch_threshold:
            tile_m = B  # one full-extent step: no padding, no extra grid iter
        else:
            # Balanced 2-way split (v7x has 2 TCs), rounded up to 128 lanes so
            # the output block is lane-dense; capped to keep tiles VMEM-friendly.
            tile_m = min(tile_cap, _round_up(pl.cdiv(B, 2), 128))
    n_tiles = pl.cdiv(B, tile_m)
    if n_tiles > 1:
        assert tile_m % 128 == 0, "multi-tile runs need 128-multiple row tiles"
    B_pad = n_tiles * tile_m

    x_pad = x_in if B_pad == B else jnp.pad(x_in, ((0, B_pad - B), (0, 0)))

    full = lambda shape: pl.BlockSpec(shape, lambda i: (0, 0))

    flops = 2 * B_pad * (IN * H + 2 * H * H + H)
    weight_bytes = w_itemsize * (IN * H + 2 * H * H + H) + 4 * (3 * H + 1)
    bytes_accessed = int(x_pad.dtype.itemsize * B_pad * IN + 4 * B_pad
                         + weight_bytes)

    # VMEM: x/out tiles are double-buffered; weights + biases are resident
    # (also double-buffered by default, counted as such).
    tile_bytes = x_pad.dtype.itemsize * tile_m * IN + 4 * tile_m
    vmem_est = 2 * (tile_bytes + weight_bytes) + (1 << 20)
    vmem_limit = int(min(max(vmem_est, 32 * 2**20), 64 * 2**20))

    out_row = pl.pallas_call(
        mlp_kernel,
        out_shape=jax.ShapeDtypeStruct((1, B_pad), jnp.float32),
        grid=(n_tiles,),
        in_specs=[
            pl.BlockSpec((tile_m, IN), lambda i: (i, 0)),   # x row tile
            full((IN, H)), full((1, H)),                    # layer 1
            full((H, H)),  full((1, H)),                    # layer 2
            full((H, H)),  full((1, H)),                    # layer 3
            full((1, H)),  full((1, 1)),                    # output head
        ],
        out_specs=pl.BlockSpec((1, tile_m), lambda i: (0, i)),
        compiler_params=pltpu.CompilerParams(
            dimension_semantics=("parallel",),
            vmem_limit_bytes=vmem_limit),
        cost_estimate=pl.CostEstimate(
            flops=flops, transcendentals=0, bytes_accessed=bytes_accessed),
    )(x_pad, w1, b1, w2, b2, w3, b3, w4t, b4)

    # (1, B_pad) lane-dense slab -> (B, 1) column, matching nn.Linear output.
    return out_row[0, :B][:, None]


def init_params(key, input_size, hidden_size):
    """Deterministic init mimicking PyTorch nn.Linear (uniform +/-1/sqrt(fan_in))."""
    dims = [(input_size, hidden_size),
            (hidden_size, hidden_size),
            (hidden_size, hidden_size),
            (hidden_size, 1)]
    params = {}
    keys = jax.random.split(key, 2 * len(dims))
    for idx, (fan_in, fan_out) in enumerate(dims):
        bound = 1.0 / jnp.sqrt(jnp.float32(fan_in))
        w = jax.random.uniform(keys[2 * idx], (fan_in, fan_out),
                               minval=-bound, maxval=bound, dtype=jnp.float32)
        b = jax.random.uniform(keys[2 * idx + 1], (1, fan_out),
                               minval=-bound, maxval=bound, dtype=jnp.float32)
        params[f"w{idx + 1}"] = w
        params[f"b{idx + 1}"] = b
    return params


def reference_forward(x, params):
    h = x
    for i in range(1, 4):
        h = jnp.maximum(h @ params[f"w{i}"] + params[f"b{i}"], 0.0)
    return h @ params["w4"] + params["b4"]


if __name__ == "__main__":
    key = jax.random.PRNGKey(0)
    k_x, k_p, k_x2 = jax.random.split(key, 3)

    input_size, hidden_size = 16, 32
    params = init_params(k_p, input_size, hidden_size)

    # 1) Small batch: single full-extent grid step (no padding, no forced tile).
    x_small = jax.random.normal(k_x, (16, input_size), dtype=jnp.float32)
    out_small = jax.block_until_ready(precipitation_classifier(x_small, params))
    ref_small = reference_forward(x_small, params)
    assert out_small.shape == (16, 1)
    assert jnp.allclose(out_small, ref_small, atol=1e-4, rtol=1e-3), "small-batch mismatch"

    # 2) Larger batch forced through the tiled path (128-row tiles, padding
    #    sliced off) to exercise the multi-step "parallel" grid.
    x_big = jax.random.normal(k_x2, (300, input_size), dtype=jnp.float32)
    out_big = jax.block_until_ready(
        precipitation_classifier(x_big, params, tile_m=128))
    ref_big = reference_forward(x_big, params)
    assert out_big.shape == (300, 1)
    assert jnp.allclose(out_big, ref_big, atol=1e-4, rtol=1e-3), "tiled-path mismatch"

    # 3) bf16 operands with f32 accumulation (looser tolerance vs f32 reference).
    out_bf16 = jax.block_until_ready(
        precipitation_classifier(x_small, params, use_bf16=True))
    assert out_bf16.shape == (16, 1)
    assert jnp.allclose(out_bf16, ref_small, atol=5e-2, rtol=5e-2), "bf16 mismatch"

    print("KERNEL_OK")
</pallas_src>

<mosaic_0001>
module attributes {stable_mosaic.version = 11 : i64} {
  func.func @mlp_kernel(%arg0: i32, %arg1: memref<16x16xf32, #tpu.memory_space<vmem>>, %arg2: memref<16x32xf32, #tpu.memory_space<vmem>>, %arg3: memref<1x32xf32, #tpu.memory_space<vmem>>, %arg4: memref<32x32xf32, #tpu.memory_space<vmem>>, %arg5: memref<1x32xf32, #tpu.memory_space<vmem>>, %arg6: memref<32x32xf32, #tpu.memory_space<vmem>>, %arg7: memref<1x32xf32, #tpu.memory_space<vmem>>, %arg8: memref<1x32xf32, #tpu.memory_space<vmem>>, %arg9: memref<1x1xf32, #tpu.memory_space<vmem>>, %arg10: memref<1x16xf32, #tpu.memory_space<vmem>>) attributes {dimension_semantics = [#tpu.dimension_semantics<parallel>], iteration_bounds = array<i64: 1>, scalar_prefetch = 0 : i64, scratch_operands = 0 : i64, tpu.core_type = #tpu.core_type<tc>, window_params = [{transform_indices = @transform_0, window_bounds = array<i64: 16, 16>}, {pipeline_mode = #tpu.pipeline_mode<synchronous>, transform_indices = @transform_1, window_bounds = array<i64: 16, 32>}, {pipeline_mode = #tpu.pipeline_mode<synchronous>, transform_indices = @transform_2, window_bounds = array<i64: 1, 32>}, {pipeline_mode = #tpu.pipeline_mode<synchronous>, transform_indices = @transform_3, window_bounds = array<i64: 32, 32>}, {pipeline_mode = #tpu.pipeline_mode<synchronous>, transform_indices = @transform_4, window_bounds = array<i64: 1, 32>}, {pipeline_mode = #tpu.pipeline_mode<synchronous>, transform_indices = @transform_5, window_bounds = array<i64: 32, 32>}, {pipeline_mode = #tpu.pipeline_mode<synchronous>, transform_indices = @transform_6, window_bounds = array<i64: 1, 32>}, {pipeline_mode = #tpu.pipeline_mode<synchronous>, transform_indices = @transform_7, window_bounds = array<i64: 1, 32>}, {pipeline_mode = #tpu.pipeline_mode<synchronous>, transform_indices = @transform_8, window_bounds = array<i64: 1, 1>}, {transform_indices = @transform_9, window_bounds = array<i64: 1, 16>}]} {
    %c0 = arith.constant 0 : index
    %c0_0 = arith.constant 0 : index
    %0 = vector.load %arg1[%c0, %c0_0] : memref<16x16xf32, #tpu.memory_space<vmem>>, vector<16x16xf32>
    %c0_1 = arith.constant 0 : index
    %c0_2 = arith.constant 0 : index
    %1 = vector.load %arg2[%c0_1, %c0_2] : memref<16x32xf32, #tpu.memory_space<vmem>>, vector<16x32xf32>
    %cst = arith.constant dense<0.000000e+00> : vector<16x32xf32>
    %2 = tpu.matmul %0, %1, %cst {dimension_numbers = #tpu.dot_dimension_numbers<[1], [0], [0], [1], [0, 0, 1, 1], [], []>} : vector<16x16xf32>, vector<16x32xf32>, vector<16x32xf32> -> vector<16x32xf32>
    %c0_3 = arith.constant 0 : index
    %c0_4 = arith.constant 0 : index
    %3 = vector.load %arg3[%c0_3, %c0_4] : memref<1x32xf32, #tpu.memory_space<vmem>>, vector<1x32xf32>
    %4 = vector.broadcast %3 : vector<1x32xf32> to vector<16x32xf32>
    %5 = arith.addf %2, %4 : vector<16x32xf32>
    %cst_5 = arith.constant 0.000000e+00 : f32
    %6 = vector.broadcast %cst_5 : f32 to vector<16x32xf32>
    %7 = arith.maximumf %5, %6 : vector<16x32xf32>
    %c0_6 = arith.constant 0 : index
    %c0_7 = arith.constant 0 : index
    %8 = vector.load %arg4[%c0_6, %c0_7] : memref<32x32xf32, #tpu.memory_space<vmem>>, vector<32x32xf32>
    %cst_8 = arith.constant dense<0.000000e+00> : vector<16x32xf32>
    %9 = tpu.matmul %7, %8, %cst_8 {dimension_numbers = #tpu.dot_dimension_numbers<[1], [0], [0], [1], [0, 0, 1, 1], [], []>} : vector<16x32xf32>, vector<32x32xf32>, vector<16x32xf32> -> vector<16x32xf32>
    %c0_9 = arith.constant 0 : index
    %c0_10 = arith.constant 0 : index
    %10 = vector.load %arg5[%c0_9, %c0_10] : memref<1x32xf32, #tpu.memory_space<vmem>>, vector<1x32xf32>
    %11 = vector.broadcast %10 : vector<1x32xf32> to vector<16x32xf32>
    %12 = arith.addf %9, %11 : vector<16x32xf32>
    %cst_11 = arith.constant 0.000000e+00 : f32
    %13 = vector.broadcast %cst_11 : f32 to vector<16x32xf32>
    %14 = arith.maximumf %12, %13 : vector<16x32xf32>
    %c0_12 = arith.constant 0 : index
    %c0_13 = arith.constant 0 : index
    %15 = vector.load %arg6[%c0_12, %c0_13] : memref<32x32xf32, #tpu.memory_space<vmem>>, vector<32x32xf32>
    %cst_14 = arith.constant dense<0.000000e+00> : vector<16x32xf32>
    %16 = tpu.matmul %14, %15, %cst_14 {dimension_numbers = #tpu.dot_dimension_numbers<[1], [0], [0], [1], [0, 0, 1, 1], [], []>} : vector<16x32xf32>, vector<32x32xf32>, vector<16x32xf32> -> vector<16x32xf32>
    %c0_15 = arith.constant 0 : index
    %c0_16 = arith.constant 0 : index
    %17 = vector.load %arg7[%c0_15, %c0_16] : memref<1x32xf32, #tpu.memory_space<vmem>>, vector<1x32xf32>
    %18 = vector.broadcast %17 : vector<1x32xf32> to vector<16x32xf32>
    %19 = arith.addf %16, %18 : vector<16x32xf32>
    %cst_17 = arith.constant 0.000000e+00 : f32
    %20 = vector.broadcast %cst_17 : f32 to vector<16x32xf32>
    %21 = arith.maximumf %19, %20 : vector<16x32xf32>
    %c0_18 = arith.constant 0 : index
    %c0_19 = arith.constant 0 : index
    %22 = vector.load %arg8[%c0_18, %c0_19] : memref<1x32xf32, #tpu.memory_space<vmem>>, vector<1x32xf32>
    %cst_20 = arith.constant dense<0.000000e+00> : vector<1x16xf32>
    %23 = tpu.matmul %22, %21, %cst_20 {dimension_numbers = #tpu.dot_dimension_numbers<[1], [1], [0], [0], [0, 0, 1, 0], [], []>} : vector<1x32xf32>, vector<16x32xf32>, vector<1x16xf32> -> vector<1x16xf32>
    %c0_21 = arith.constant 0 : index
    %c0_22 = arith.constant 0 : index
    %24 = vector.load %arg9[%c0_21, %c0_22] : memref<1x1xf32, #tpu.memory_space<vmem>>, vector<1x1xf32>
    %25 = vector.broadcast %24 : vector<1x1xf32> to vector<1x16xf32>
    %26 = arith.addf %23, %25 : vector<1x16xf32>
    %c0_23 = arith.constant 0 : index
    %c0_24 = arith.constant 0 : index
    %27 = vector.load %arg10[%c0_23, %c0_24] : memref<1x16xf32, #tpu.memory_space<vmem>>, vector<1x16xf32>
    tpu.vector_store %arg10[%c0_23, %c0_24], %26 {strides = array<i32>} : memref<1x16xf32, #tpu.memory_space<vmem>>, vector<1x16xf32>,
    return
  }
  func.func @transform_0(%arg0: i32) -> (i32, i32) {
    %c0_i32 = arith.constant 0 : i32
    %c0_i32_0 = arith.constant 0 : i32
    return %arg0, %c0_i32 : i32, i32
  }
  func.func @transform_1(%arg0: i32) -> (i32, i32) {
    %c0_i32 = arith.constant 0 : i32
    %c0_i32_0 = arith.constant 0 : i32
    %c0_i32_1 = arith.constant 0 : i32
    return %c0_i32, %c0_i32_0 : i32, i32
  }
  func.func @transform_2(%arg0: i32) -> (i32, i32) {
    %c0_i32 = arith.constant 0 : i32
    %c0_i32_0 = arith.constant 0 : i32
    %c0_i32_1 = arith.constant 0 : i32
    return %c0_i32, %c0_i32_0 : i32, i32
  }
  func.func @transform_3(%arg0: i32) -> (i32, i32) {
    %c0_i32 = arith.constant 0 : i32
    %c0_i32_0 = arith.constant 0 : i32
    %c0_i32_1 = arith.constant 0 : i32
    return %c0_i32, %c0_i32_0 : i32, i32
  }
  func.func @transform_4(%arg0: i32) -> (i32, i32) {
    %c0_i32 = arith.constant 0 : i32
    %c0_i32_0 = arith.constant 0 : i32
    %c0_i32_1 = arith.constant 0 : i32
    return %c0_i32, %c0_i32_0 : i32, i32
  }
  func.func @transform_5(%arg0: i32) -> (i32, i32) {
    %c0_i32 = arith.constant 0 : i32
    %c0_i32_0 = arith.constant 0 : i32
    %c0_i32_1 = arith.constant 0 : i32
    return %c0_i32, %c0_i32_0 : i32, i32
  }
  func.func @transform_6(%arg0: i32) -> (i32, i32) {
    %c0_i32 = arith.constant 0 : i32
    %c0_i32_0 = arith.constant 0 : i32
    %c0_i32_1 = arith.constant 0 : i32
    return %c0_i32, %c0_i32_0 : i32, i32
  }
  func.func @transform_7(%arg0: i32) -> (i32, i32) {
    %c0_i32 = arith.constant 0 : i32
    %c0_i32_0 = arith.constant 0 : i32
    %c0_i32_1 = arith.constant 0 : i32
    return %c0_i32, %c0_i32_0 : i32, i32
  }
  func.func @transform_8(%arg0: i32) -> (i32, i32) {
    %c0_i32 = arith.constant 0 : i32
    %c0_i32_0 = arith.constant 0 : i32
    %c0_i32_1 = arith.constant 0 : i32
    return %c0_i32, %c0_i32_0 : i32, i32
  }
  func.func @transform_9(%arg0: i32) -> (i32, i32) {
    %c0_i32 = arith.constant 0 : i32
    %c0_i32_0 = arith.constant 0 : i32
    return %c0_i32, %arg0 : i32, i32
  }
}

</mosaic_0001>

<llo_original>
// kernel: tpu_custom_call.1
$region0: #{tpu_custom_call.1}
  #allocation0 [shape = 'u32[]', space=smem, size = 0x4, offset = 0x4, fixed_abs, tag = 'smem constant byte address 0x4 - core index']
  #allocation1 [shape = 'u32[72,128]{1,0:T(1,128)}', space=vmem, size = 0x9000, scoped, tag = 'internal scratch']
  #allocation2 [shape = 'f32[1,1]{1,0:T(1,128)S(1)}', space=vmem, size = 0x200, scoped, tag = 'scoped memory for tpu_custom_call.1']
  %s0 = inlined_call_operand.hbm [shape: f32[16,16], index: 0, kind: input, shape index: {}]
  %s1 = inlined_call_operand.hbm [shape: f32[16,32], index: 1, kind: input, shape index: {}]
  %s2 = inlined_call_operand.vmem [shape: f32[1,32], index: 2, kind: input, shape index: {}]
  %s3 = inlined_call_operand.hbm [shape: f32[32,32], index: 3, kind: input, shape index: {}]
  %s4 = inlined_call_operand.vmem [shape: f32[1,32], index: 4, kind: input, shape index: {}]
  %s5 = inlined_call_operand.hbm [shape: f32[32,32], index: 5, kind: input, shape index: {}]
  %s6 = inlined_call_operand.vmem [shape: f32[1,32], index: 6, kind: input, shape index: {}]
  %s7 = inlined_call_operand.vmem [shape: f32[1,32], index: 7, kind: input, shape index: {}]
  %s8 = inlined_call_operand.<no memory space> [shape: f32[1,1], index: 8, kind: input, shape index: {}]
  %s9 = inlined_call_operand.hbm [shape: f32[1,16], index: 9, kind: output, shape index: {}]
  %s10 = sld [smem:[#allocation0]]
  $region62: #{tpu_custom_call.1} parent=0
    _
  %s12 = ssub.s32 1, %s10
  %s13 = scalar_select 0, %s12, %s10
  %v14 = vstv %s8
  %15 = vst [vmem:[#allocation2] sm:$0x1] %v14
  $region1: #{tpu_custom_call.1} parent=0
    #allocation3 [shape = 'u8[8192]{0}', space=vmem, size = 0x2000, scoped, tag = 'input window, operand 0, single buffered']
    #allocation4 [shape = 's32[1]{0}', space=sflag, size = 0x4, scoped, tag = 'scoped memory for tpu_custom_call.1']
    #allocation5 [shape = 's32[1]{0}', space=sflag, size = 0x4, scoped, tag = 'scoped memory for tpu_custom_call.1']
    #allocation6 [shape = 'u8[8192]{0}', space=vmem, size = 0x2000, scoped, tag = 'input window, operand 1, single buffered']
    #allocation7 [shape = 's32[1]{0}', space=sflag, size = 0x4, scoped, tag = 'scoped memory for tpu_custom_call.1']
    #allocation8 [shape = 'u8[16384]{0}', space=vmem, size = 0x4000, scoped, tag = 'input window, operand 3, single buffered']
    #allocation9 [shape = 'u8[16384]{0}', space=vmem, size = 0x4000, scoped, tag = 'input window, operand 5, single buffered']
    #allocation10 [shape = 's32[1]{0}', space=sflag, size = 0x4, scoped, tag = 'scoped memory for tpu_custom_call.1']
    #allocation11 [shape = 'u8[512]{0}', space=vmem, size = 0x400, scoped, tag = 'output window, operand 0, single buffered']
    %16 = vsyncpa [#allocation4], 0
    %17 = vsyncpa [#allocation7], 0
    %18 = vsyncpa [#allocation10], 0
    %19 = vsyncpa [#allocation5], 0
    // Predicated region
    $region2: #{tpu_custom_call.1} parent=1 // pred_check
      _
    $region3: #{tpu_custom_call.1} parent=1 // pred_check_branch
      %21 = sbr.rel (0) target = $region5
    $region4: #{tpu_custom_call.1} parent=1 // pred_region
      %23 = vsyncadd [#allocation4], 0
      %s24 = sshll.u32 %s0, 4
      %s25 = int_to_ptr.hbm [resolvable:$true] %s24
      %s26 = sshll.u32 [#allocation3], 4
      %s27 = int_to_ptr.vmem [resolvable:$true] %s26
      %32 = dma.hbm_to_vmem [thread:$0]  %s25, 256, %s27, [#allocation4], 128, 128, 8
    $region5: #{tpu_custom_call.1} parent=1 // pred_fallthru
      _
    // Predicated region
    $region6: #{tpu_custom_call.1} parent=1 // pred_check
      _
    $region7: #{tpu_custom_call.1} parent=1 // pred_check_branch
      %34 = sbr.rel (0) target = $region9
    $region8: #{tpu_custom_call.1} parent=1 // pred_region
      %36 = vsyncadd [#allocation7], 0
      %s37 = sshll.u32 %s1, 4
      %s38 = int_to_ptr.hbm [resolvable:$true] %s37
      %s39 = sshll.u32 [#allocation6], 4
      %s40 = int_to_ptr.vmem [resolvable:$true] %s39
      %45 = dma.hbm_to_vmem [thread:$0]  %s38, 256, %s40, [#allocation7], 128, 128, 8
    $region9: #{tpu_custom_call.1} parent=1 // pred_fallthru
      _
    // Predicated region
    $region10: #{tpu_custom_call.1} parent=1 // pred_check
      _
    $region11: #{tpu_custom_call.1} parent=1 // pred_check_branch
      %47 = sbr.rel (0) target = $region13
    $region12: #{tpu_custom_call.1} parent=1 // pred_region
      _
    $region13: #{tpu_custom_call.1} parent=1 // pred_fallthru
      _
    // Predicated region
    $region14: #{tpu_custom_call.1} parent=1 // pred_check
      _
    $region15: #{tpu_custom_call.1} parent=1 // pred_check_branch
      %49 = sbr.rel (0) target = $region17
    $region16: #{tpu_custom_call.1} parent=1 // pred_region
      %51 = vsyncadd [#allocation7], 0
      %s52 = sshll.u32 %s3, 4
      %s53 = int_to_ptr.hbm [resolvable:$true] %s52
      %s54 = sshll.u32 [#allocation8], 4
      %s55 = int_to_ptr.vmem [resolvable:$true] %s54
      %60 = dma.hbm_to_vmem [thread:$0]  %s53, 512, %s55, [#allocation7], 128, 128, 8
    $region17: #{tpu_custom_call.1} parent=1 // pred_fallthru
      _
    // Predicated region
    $region18: #{tpu_custom_call.1} parent=1 // pred_check
      _
    $region19: #{tpu_custom_call.1} parent=1 // pred_check_branch
      %62 = sbr.rel (0) target = $region21
    $region20: #{tpu_custom_call.1} parent=1 // pred_region
      _
    $region21: #{tpu_custom_call.1} parent=1 // pred_fallthru
      _
    // Predicated region
    $region22: #{tpu_custom_call.1} parent=1 // pred_check
      _
    $region23: #{tpu_custom_call.1} parent=1 // pred_check_branch
      %64 = sbr.rel (0) target = $region25
    $region24: #{tpu_custom_call.1} parent=1 // pred_region
      %66 = vsyncadd [#allocation10], 0
      %s67 = sshll.u32 %s5, 4
      %s68 = int_to_ptr.hbm [resolvable:$true] %s67
      %s69 = sshll.u32 [#allocation9], 4
      %s70 = int_to_ptr.vmem [resolvable:$true] %s69
      %75 = dma.hbm_to_vmem [thread:$0]  %s68, 512, %s70, [#allocation10], 128, 128, 8
    $region25: #{tpu_custom_call.1} parent=1 // pred_fallthru
      _
    // Predicated region
    $region26: #{tpu_custom_call.1} parent=1 // pred_check
      _
    $region27: #{tpu_custom_call.1} parent=1 // pred_check_branch
      %77 = sbr.rel (0) target = $region29
    $region28: #{tpu_custom_call.1} parent=1 // pred_region
      _
    $region29: #{tpu_custom_call.1} parent=1 // pred_fallthru
      _
    // Predicated region
    $region30: #{tpu_custom_call.1} parent=1 // pred_check
      _
    $region31: #{tpu_custom_call.1} parent=1 // pred_check_branch
      %79 = sbr.rel (0) target = $region33
    $region32: #{tpu_custom_call.1} parent=1 // pred_region
      _
    $region33: #{tpu_custom_call.1} parent=1 // pred_fallthru
      _
    // Predicated region
    $region34: #{tpu_custom_call.1} parent=1 // pred_check
      _
    $region35: #{tpu_custom_call.1} parent=1 // pred_check_branch
      %81 = sbr.rel (0) target = $region37
    $region36: #{tpu_custom_call.1} parent=1 // pred_region
      _
    $region37: #{tpu_custom_call.1} parent=1 // pred_fallthru
      _
    // Predicated region
    $region38: #{tpu_custom_call.1} parent=1 // pred_check
      _
    $region39: #{tpu_custom_call.1} parent=1 // pred_check_branch
      %83 = sbr.rel (0) target = $region41
    $region40: #{tpu_custom_call.1} parent=1 // pred_region
      %85 = dma.done [#allocation4], 256
    $region41: #{tpu_custom_call.1} parent=1 // pred_fallthru
      _
    // Predicated region
    $region42: #{tpu_custom_call.1} parent=1 // pred_check
      _
    $region43: #{tpu_custom_call.1} parent=1 // pred_check_branch
      %87 = sbr.rel (0) target = $region45
    $region44: #{tpu_custom_call.1} parent=1 // pred_region
      %89 = dma.done [#allocation7], 256
    $region45: #{tpu_custom_call.1} parent=1 // pred_fallthru
      _
    // Predicated region
    $region46: #{tpu_custom_call.1} parent=1 // pred_check
      _
    $region47: #{tpu_custom_call.1} parent=1 // pred_check_branch
      %91 = sbr.rel (0) target = $region49
    $region48: #{tpu_custom_call.1} parent=1 // pred_region
      %93 = dma.done [#allocation7], 512
    $region49: #{tpu_custom_call.1} parent=1 // pred_fallthru
      _
    // Predicated region
    $region50: #{tpu_custom_call.1} parent=1 // pred_check
      _
    $region51: #{tpu_custom_call.1} parent=1 // pred_check_branch
      %95 = sbr.rel (0) target = $region53
    $region52: #{tpu_custom_call.1} parent=1 // pred_region
      %97 = dma.done [#allocation10], 512
    $region53: #{tpu_custom_call.1} parent=1 // pred_fallthru
      _
    %v98 = vld [vmem:[#allocation3] sm:$0xff]
    %v99 = vld [vmem:[#allocation3 + $0x8] sm:$0xff]
    %v100 = vld [vmem:[#allocation6] sm:$0xff]
    %v101 = vld [vmem:[#allocation6 + $0x8] sm:$0xff]
    %v102 = vld [vmem:[%s2] sm:$0x1]
    %v104 = vperm.slane %v102, 0
    %vm106 = vcmask 130048
    %v108 = vsel %vm106, %v98, 0
    %v111 = vsel %vm106, %v99, 0
    %113 = vmatpush.msra.mxu0 0.0
    %114 = vmatpush.msra.mxu0 0.0
    %115 = vmatpush.msra.mxu0 0.0
    %116 = vmatpush.msra.mxu0 0.0
    %117 = vmatpush.msra.mxu0 0.0
    %118 = vmatpush.msra.mxu0 0.0
    %119 = vmatpush.msra.mxu0 0.0
    %120 = vmatpush.msra.mxu0 0.0
    %121 = vmatpush.msra.mxu0 0.0
    %122 = vmatpush.msra.mxu0 0.0
    %123 = vmatpush.msra.mxu0 0.0
    %124 = vmatpush.msra.mxu0 0.0
    %125 = vmatpush.msra.mxu0 0.0
    %126 = vmatpush.msra.mxu0 0.0
    %127 = vmatpush.msra.mxu0 %v101
    %128 = vmatpush.msra.mxu0 %v100
    %129 = vmatmul.f32.gmra.mxu0 %v108
    %v130 = vpop.f32.mrf.mxu0
    %v131 = vadd.f32 %v104, %v130
    %132 = vmatmul.f32.gmra.mxu0 %v111
    %v133 = vpop.f32.mrf.mxu0
    %v134 = vadd.f32 %v104, %v133
    %135 = vdwg.mxu0
    %v136 = vmax.f32 %v131, 0.0
    %v137 = vmax.f32 %v134, 0.0
    %v138 = vld [vmem:[#allocation8] sm:$0xff]
    %v139 = vld [vmem:[#allocation8 + $0x8] sm:$0xff]
    %v140 = vld [vmem:[#allocation8 + $0x10] sm:$0xff]
    %v141 = vld [vmem:[#allocation8 + $0x18] sm:$0xff]
    %v142 = vld [vmem:[%s4] sm:$0x1]
    %v144 = vperm.slane %v142, 0
    %vm146 = vcmask 261120
    %v148 = vsel %vm146, %v136, 0
    %v151 = vsel %vm146, %v137, 0
    %153 = vmatpush.msra.mxu0 0.0
    %154 = vmatpush.msra.mxu0 0.0
    %155 = vmatpush.msra.mxu0 0.0
    %156 = vmatpush.msra.mxu0 0.0
    %157 = vmatpush.msra.mxu0 0.0
    %158 = vmatpush.msra.mxu0 0.0
    %159 = vmatpush.msra.mxu0 0.0
    %160 = vmatpush.msra.mxu0 0.0
    %161 = vmatpush.msra.mxu0 0.0
    %162 = vmatpush.msra.mxu0 0.0
    %163 = vmatpush.msra.mxu0 0.0
    %164 = vmatpush.msra.mxu0 0.0
    %165 = vmatpush.msra.mxu0 %v141
    %166 = vmatpush.msra.mxu0 %v140
    %167 = vmatpush.msra.mxu0 %v139
    %168 = vmatpush.msra.mxu0 %v138
    %169 = vmatmul.f32.gmra.mxu0 %v148
    %v170 = vpop.f32.mrf.mxu0
    %v171 = vadd.f32 %v144, %v170
    %172 = vmatmul.f32.gmra.mxu0 %v151
    %v173 = vpop.f32.mrf.mxu0
    %v174 = vadd.f32 %v144, %v173
    %175 = vdwg.mxu0
    %v176 = vmax.f32 %v171, 0.0
    %v177 = vmax.f32 %v174, 0.0
    %v178 = vld [vmem:[#allocation9] sm:$0xff]
    %v179 = vld [vmem:[#allocation9 + $0x8] sm:$0xff]
    %v180 = vld [vmem:[#allocation9 + $0x10] sm:$0xff]
    %v181 = vld [vmem:[#allocation9 + $0x18] sm:$0xff]
    %v182 = vld [vmem:[%s6] sm:$0x1]
    %v184 = vperm.slane %v182, 0
    %v187 = vsel %vm146, %v176, 0
    %v190 = vsel %vm146, %v177, 0
    %192 = vmatpush.msra.mxu0 0.0
    %193 = vmatpush.msra.mxu0 0.0
    %194 = vmatpush.msra.mxu0 0.0
    %195 = vmatpush.msra.mxu0 0.0
    %196 = vmatpush.msra.mxu0 0.0
    %197 = vmatpush.msra.mxu0 0.0
    %198 = vmatpush.msra.mxu0 0.0
    %199 = vmatpush.msra.mxu0 0.0
    %200 = vmatpush.msra.mxu0 0.0
    %201 = vmatpush.msra.mxu0 0.0
    %202 = vmatpush.msra.mxu0 0.0
    %203 = vmatpush.msra.mxu0 0.0
    %204 = vmatpush.msra.mxu0 %v181
    %205 = vmatpush.msra.mxu0 %v180
    %206 = vmatpush.msra.mxu0 %v179
    %207 = vmatpush.msra.mxu0 %v178
    %208 = vmatmul.f32.gmra.mxu0 %v187
    %v209 = vpop.f32.mrf.mxu0
    %v210 = vadd.f32 %v184, %v209
    %211 = vmatmul.f32.gmra.mxu0 %v190
    %v212 = vpop.f32.mrf.mxu0
    %v213 = vadd.f32 %v184, %v212
    %214 = vdwg.mxu0
    %v215 = vmax.f32 %v210, 0.0
    %v216 = vmax.f32 %v213, 0.0
    %v217 = vld [vmem:[%s7] sm:$0x1]
    %v218 = vld [vmem:[#allocation2] sm:$0x1]
    %220 = vset.pattern.permute.xlu0 0
    %221 = vperm.xlu0 %220, %v218
    %v222 = vpop.permute.xlu0 %221
    %v224 = vperm.slane %v222, 0
    %v226 = vsel %vm146, %v217, 0
    %v229 = vsel %vm146, %v215, 0
    %v232 = vsel %vm146, %v216, 0
    %234 = vmatpush.xpose.msra.mxu0 0.0
    %235 = vmatpush.xpose.msra.mxu0 0.0
    %236 = vmatpush.xpose.msra.mxu0 0.0
    %237 = vmatpush.xpose.msra.mxu0 0.0
    %238 = vmatpush.xpose.msra.mxu0 0.0
    %239 = vmatpush.xpose.msra.mxu0 0.0
    %240 = vmatpush.xpose.msra.mxu0 0.0
    %241 = vmatpush.xpose.msra.mxu0 0.0
    %242 = vmatpush.xpose.msra.mxu0 0.0
    %243 = vmatpush.xpose.msra.mxu0 0.0
    %244 = vmatpush.xpose.msra.mxu0 0.0
    %245 = vmatpush.xpose.msra.mxu0 0.0
    %246 = vmatpush.xpose.msra.mxu0 0.0
    %247 = vmatpush.xpose.msra.mxu0 0.0
    %248 = vmatpush.xpose.msra.mxu0 %v232
    %249 = vmatpush.xpose.msra.mxu0 %v229
    %250 = vmatmul.f32.gmra.mxu0 %v226
    %v251 = vpop.f32.mrf.mxu0
    %v252 = vadd.f32 %v224, %v251
    %253 = vdwg.mxu0
    %vm254 = vcmask 122880
    %255 = vst.msk [vmem:[#allocation11] sm:$0x1] %vm254, %v252
    // Predicated region
    $region54: #{tpu_custom_call.1} parent=1 // pred_check
      _
    $region55: #{tpu_custom_call.1} parent=1 // pred_check_branch
      %257 = sbr.rel (0) target = $region57
    $region56: #{tpu_custom_call.1} parent=1 // pred_region
      %259 = vsyncadd [#allocation5], 0
      %s261 = sshll.u32 [#allocation11], 4
      %s262 = int_to_ptr.vmem [resolvable:$true] %s261
      %s263 = sshll.u32 %s9, 4
      %s264 = int_to_ptr.hbm [resolvable:$true] %s263
      %266 = dma.vmem_to_hbm [thread:$0]  %s262, 16, %s264, [#allocation5]
    $region57: #{tpu_custom_call.1} parent=1 // pred_fallthru
      _
    // Predicated region
    $region58: #{tpu_custom_call.1} parent=1 // pred_check
      _
    $region59: #{tpu_custom_call.1} parent=1 // pred_check_branch
      %268 = sbr.rel (0) target = $region61
    $region60: #{tpu_custom_call.1} parent=1 // pred_region
      %270 = dma.done [#allocation5], 16
    $region61: #{tpu_custom_call.1} parent=1 // pred_fallthru
      _
    %271 = vsyncpa [#allocation4], 1
    %272 = vsyncpa [#allocation7], 1
    %273 = vsyncpa [#allocation10], 1
    %274 = vsyncpa [#allocation5], 1

</llo_original>
